<compile_context>
chip_gen: v7x
topology: tpu7x:2x2x1
jax: 0.10.0
libtpu: 0.0.40
codegen_flags: <defaults>
</compile_context>

<pallas_src>
import functools

import jax
import jax.numpy as jnp
from jax import lax
from jax.experimental import pallas as pl
from jax.experimental.pallas import tpu as pltpu

EPS = 1e-5
NEG_SLOPE = 0.01
LANES = 128


def _round_up(x, m):
    return ((x + m - 1) // m) * m


# ---------------------------------------------------------------------------
# Pass 1: global per-channel sum / sum-of-squares (accumulator across grid).
#   y_ref : (r_tile, 128) slab of conv output; channel = lane % c_pad
#   sum_ref, sq_ref : (1, 128) resident accumulators (same block every step)
# ---------------------------------------------------------------------------
def _bn_stats_kernel(y_ref, sum_ref, sq_ref):
    @pl.when(pl.program_id(0) == 0)
    def _init():
        sum_ref[...] = jnp.zeros_like(sum_ref)
        sq_ref[...] = jnp.zeros_like(sq_ref)

    y = y_ref[...]
    sum_ref[...] += jnp.sum(y, axis=0, keepdims=True)
    sq_ref[...] += jnp.sum(y * y, axis=0, keepdims=True)


# ---------------------------------------------------------------------------
# Pass 2: fused affine BN + LeakyReLU(0.01) (embarrassingly parallel).
#   scale/shift are per-lane vectors (channel folded into the 128 lanes).
# ---------------------------------------------------------------------------
def _bn_act_kernel(y_ref, scale_ref, shift_ref, o_ref):
    z = y_ref[...] * scale_ref[...] + shift_ref[...]
    # LeakyReLU(a) with 0 < a < 1:  max(z, a*z)
    o_ref[...] = jnp.maximum(z, NEG_SLOPE * z).astype(o_ref.dtype)


@functools.partial(jax.jit, static_argnames=("rows_per_tile",))
def conv_block_forward(x, weight, bias, gamma, beta, *, rows_per_tile=1024):
    # x: (N, C_in, D, H, W); weight: (C_out, C_in, 3, 3, 3); bias/gamma/beta: (C_out,)
    del bias  # exactly cancelled by BatchNorm's batch-mean subtraction

    n, c_in, d, h, w = x.shape
    c_out = weight.shape[0]
    m = n * d * h * w

    # ---- Conv3d (stride 1, pad 1) in XLA, channels-last. No im2col in HBM. ----
    x_ndhwc = jnp.transpose(x, (0, 2, 3, 4, 1)).astype(jnp.float32)
    w_dhwio = jnp.transpose(weight, (2, 3, 4, 1, 0)).astype(jnp.float32)
    y = lax.conv_general_dilated(
        x_ndhwc, w_dhwio,
        window_strides=(1, 1, 1),
        padding=((1, 1), (1, 1), (1, 1)),
        dimension_numbers=("NDHWC", "DHWIO", "NDHWC"),
        preferred_element_type=jnp.float32,
    )  # (N, D, H, W, C_out), f32

    # ---- Lane-dense packing: view (M, C_pad) as (R, 128), channel = lane % C_pad.
    # TODO(synk): c_out > 128 would need a multiple-of-128 lane layout with
    # per-row-phase statistics; not needed for this module's sizes.
    assert c_out <= LANES, "c_out > 128 not supported by this packing"
    c_pad = 1 << (c_out - 1).bit_length()      # next pow2 -> divides 128
    g = LANES // c_pad                         # spatial positions per 128-lane row

    y2 = y.reshape(m, c_out)
    if c_pad != c_out:
        y2 = jnp.pad(y2, ((0, 0), (0, c_pad - c_out)))

    r_needed = -(-m // g)                                        # ceil(m / g)
    r_tile = min(_round_up(rows_per_tile, 8), _round_up(r_needed, 8))
    r_pad = _round_up(r_needed, r_tile)
    m_pad = r_pad * g
    if m_pad != m:
        y2 = jnp.pad(y2, ((0, m_pad - m), (0, 0)))               # zero rows: no effect on stats
    y_lanes = y2.reshape(r_pad, LANES)                           # contiguous reshape, no copy
    num_tiles = r_pad // r_tile

    # ---- Pass 1: global per-channel statistics (exact over all M rows). ----
    lane_sum, lane_sq = pl.pallas_call(
        _bn_stats_kernel,
        grid=(num_tiles,),
        in_specs=[pl.BlockSpec((r_tile, LANES), lambda i: (i, 0))],
        out_specs=[pl.BlockSpec((1, LANES), lambda i: (0, 0)),
                   pl.BlockSpec((1, LANES), lambda i: (0, 0))],
        out_shape=[jax.ShapeDtypeStruct((1, LANES), jnp.float32),
                   jax.ShapeDtypeStruct((1, LANES), jnp.float32)],
        compiler_params=pltpu.CompilerParams(
            dimension_semantics=("arbitrary",)),
    )(y_lanes)

    # ---- Finalize mean / inv_std -> per-lane scale & shift (tiny, in XLA). ----
    ch_sum = lane_sum.reshape(g, c_pad).sum(axis=0)[:c_out]
    ch_sq = lane_sq.reshape(g, c_pad).sum(axis=0)[:c_out]
    mean = ch_sum / m
    var = jnp.maximum(ch_sq / m - mean * mean, 0.0)     # biased var (PyTorch BN norm)
    inv_std = lax.rsqrt(var + EPS)
    scale_c = gamma.astype(jnp.float32) * inv_std
    shift_c = beta.astype(jnp.float32) - mean * scale_c
    scale_l = jnp.tile(jnp.pad(scale_c, (0, c_pad - c_out)), g).reshape(1, LANES)
    shift_l = jnp.tile(jnp.pad(shift_c, (0, c_pad - c_out)), g).reshape(1, LANES)

    # ---- Pass 2: normalize + LeakyReLU, fully parallel over row-tiles. ----
    out_lanes = pl.pallas_call(
        _bn_act_kernel,
        grid=(num_tiles,),
        in_specs=[pl.BlockSpec((r_tile, LANES), lambda i: (i, 0)),
                  pl.BlockSpec((1, LANES), lambda i: (0, 0)),
                  pl.BlockSpec((1, LANES), lambda i: (0, 0))],
        out_specs=pl.BlockSpec((r_tile, LANES), lambda i: (i, 0)),
        out_shape=jax.ShapeDtypeStruct((r_pad, LANES), jnp.float32),
        compiler_params=pltpu.CompilerParams(
            dimension_semantics=("parallel",)),
    )(y_lanes, scale_l, shift_l)

    # ---- Unpack back to the PyTorch NCDHW layout. ----
    out2 = out_lanes.reshape(m_pad, c_pad)[:m, :c_out]
    out = out2.reshape(n, d, h, w, c_out)
    # Kept only for PyTorch layout parity; drop if downstream is channels-last.
    return jnp.transpose(out, (0, 4, 1, 2, 3))


def _reference(x, weight, bias, gamma, beta):
    # Pure-JAX reference of the PyTorch ConvBlock forward (training-mode BN).
    x_ndhwc = jnp.transpose(x, (0, 2, 3, 4, 1)).astype(jnp.float32)
    w_dhwio = jnp.transpose(weight, (2, 3, 4, 1, 0)).astype(jnp.float32)
    y = lax.conv_general_dilated(
        x_ndhwc, w_dhwio, (1, 1, 1), ((1, 1), (1, 1), (1, 1)),
        dimension_numbers=("NDHWC", "DHWIO", "NDHWC"),
        preferred_element_type=jnp.float32) + bias
    mean = jnp.mean(y, axis=(0, 1, 2, 3))
    var = jnp.var(y, axis=(0, 1, 2, 3))
    yn = (y - mean) * lax.rsqrt(var + EPS) * gamma + beta
    out = jnp.where(yn >= 0, yn, NEG_SLOPE * yn)
    return jnp.transpose(out, (0, 4, 1, 2, 3))


if __name__ == "__main__":
    key = jax.random.PRNGKey(0)
    k_x, k_w, k_b, k_g, k_be = jax.random.split(key, 5)

    N, C_in, C_out, D, H, W = 2, 4, 8, 16, 16, 16

    x = jax.random.normal(k_x, (N, C_in, D, H, W), dtype=jnp.float32)
    weight = 0.1 * jax.random.normal(k_w, (C_out, C_in, 3, 3, 3), dtype=jnp.float32)
    bias = 0.1 * jax.random.normal(k_b, (C_out,), dtype=jnp.float32)
    gamma = 1.0 + 0.1 * jax.random.normal(k_g, (C_out,), dtype=jnp.float32)
    beta = 0.1 * jax.random.normal(k_be, (C_out,), dtype=jnp.float32)

    # Small rows_per_tile so the demo exercises a multi-step grid (4 tiles).
    out = conv_block_forward(x, weight, bias, gamma, beta, rows_per_tile=128)
    jax.block_until_ready(out)
    assert out.shape == (N, C_out, D, H, W)

    ref = _reference(x, weight, bias, gamma, beta)
    assert jnp.allclose(out, ref, atol=2e-3, rtol=2e-3), float(jnp.max(jnp.abs(out - ref)))

    print("KERNEL_OK")
</pallas_src>

<mosaic_0001>
module attributes {stable_mosaic.version = 11 : i64} {
  func.func @_bn_stats_kernel(%arg0: i32, %arg1: memref<128x128xf32, #tpu.memory_space<vmem>>, %arg2: memref<1x128xf32, #tpu.memory_space<vmem>>, %arg3: memref<1x128xf32, #tpu.memory_space<vmem>>) attributes {dimension_semantics = [#tpu.dimension_semantics<arbitrary>], iteration_bounds = array<i64: 4>, scalar_prefetch = 0 : i64, scratch_operands = 0 : i64, tpu.core_type = #tpu.core_type<tc>, window_params = [{transform_indices = @transform_0, window_bounds = array<i64: 128, 128>}, {pipeline_mode = #tpu.pipeline_mode<synchronous>, transform_indices = @transform_1, window_bounds = array<i64: 1, 128>}, {pipeline_mode = #tpu.pipeline_mode<synchronous>, transform_indices = @transform_2, window_bounds = array<i64: 1, 128>}]} {
    %c0_i32 = arith.constant 0 : i32
    %0 = arith.cmpi eq, %arg0, %c0_i32 : i32
    %1 = arith.extui %0 : i1 to i32
    %c0_i32_0 = arith.constant 0 : i32
    %2 = arith.cmpi ne, %1, %c0_i32_0 : i32
    scf.if %2 {
      %cst_11 = arith.constant 0.000000e+00 : f32
      %15 = vector.broadcast %cst_11 : f32 to vector<1x128xf32>
      %c0_12 = arith.constant 0 : index
      %c0_13 = arith.constant 0 : index
      %16 = vector.load %arg2[%c0_12, %c0_13] : memref<1x128xf32, #tpu.memory_space<vmem>>, vector<1x128xf32>
      tpu.vector_store %arg2[%c0_12, %c0_13], %15 {strides = array<i32>} : memref<1x128xf32, #tpu.memory_space<vmem>>, vector<1x128xf32>,
      %cst_14 = arith.constant 0.000000e+00 : f32
      %17 = vector.broadcast %cst_14 : f32 to vector<1x128xf32>
      %c0_15 = arith.constant 0 : index
      %c0_16 = arith.constant 0 : index
      %18 = vector.load %arg3[%c0_15, %c0_16] : memref<1x128xf32, #tpu.memory_space<vmem>>, vector<1x128xf32>
      tpu.vector_store %arg3[%c0_15, %c0_16], %17 {strides = array<i32>} : memref<1x128xf32, #tpu.memory_space<vmem>>, vector<1x128xf32>,
    } else {
    }
    %c0 = arith.constant 0 : index
    %c0_1 = arith.constant 0 : index
    %3 = vector.load %arg1[%c0, %c0_1] : memref<128x128xf32, #tpu.memory_space<vmem>>, vector<128x128xf32>
    %c0_2 = arith.constant 0 : index
    %c0_3 = arith.constant 0 : index
    %4 = vector.load %arg2[%c0_2, %c0_3] : memref<1x128xf32, #tpu.memory_space<vmem>>, vector<1x128xf32>
    %cst = arith.constant dense<0.000000e+00> : vector<128xf32>
    %5 = vector.multi_reduction <add>, %3, %cst [0] : vector<128x128xf32> to vector<128xf32>
    %6 = vector.shape_cast %5 : vector<128xf32> to vector<1x128xf32>
    %7 = arith.addf %4, %6 : vector<1x128xf32>
    %c0_4 = arith.constant 0 : index
    %c0_5 = arith.constant 0 : index
    %8 = vector.load %arg2[%c0_4, %c0_5] : memref<1x128xf32, #tpu.memory_space<vmem>>, vector<1x128xf32>
    tpu.vector_store %arg2[%c0_4, %c0_5], %7 {strides = array<i32>} : memref<1x128xf32, #tpu.memory_space<vmem>>, vector<1x128xf32>,
    %c0_6 = arith.constant 0 : index
    %c0_7 = arith.constant 0 : index
    %9 = vector.load %arg3[%c0_6, %c0_7] : memref<1x128xf32, #tpu.memory_space<vmem>>, vector<1x128xf32>
    %10 = arith.mulf %3, %3 : vector<128x128xf32>
    %cst_8 = arith.constant dense<0.000000e+00> : vector<128xf32>
    %11 = vector.multi_reduction <add>, %10, %cst_8 [0] : vector<128x128xf32> to vector<128xf32>
    %12 = vector.shape_cast %11 : vector<128xf32> to vector<1x128xf32>
    %13 = arith.addf %9, %12 : vector<1x128xf32>
    %c0_9 = arith.constant 0 : index
    %c0_10 = arith.constant 0 : index
    %14 = vector.load %arg3[%c0_9, %c0_10] : memref<1x128xf32, #tpu.memory_space<vmem>>, vector<1x128xf32>
    tpu.vector_store %arg3[%c0_9, %c0_10], %13 {strides = array<i32>} : memref<1x128xf32, #tpu.memory_space<vmem>>, vector<1x128xf32>,
    return
  }
  func.func @transform_0(%arg0: i32) -> (i32, i32) {
    %c0_i32 = arith.constant 0 : i32
    %c0_i32_0 = arith.constant 0 : i32
    return %arg0, %c0_i32 : i32, i32
  }
  func.func @transform_1(%arg0: i32) -> (i32, i32) {
    %c0_i32 = arith.constant 0 : i32
    %c0_i32_0 = arith.constant 0 : i32
    %c0_i32_1 = arith.constant 0 : i32
    return %c0_i32, %c0_i32_0 : i32, i32
  }
  func.func @transform_2(%arg0: i32) -> (i32, i32) {
    %c0_i32 = arith.constant 0 : i32
    %c0_i32_0 = arith.constant 0 : i32
    %c0_i32_1 = arith.constant 0 : i32
    return %c0_i32, %c0_i32_0 : i32, i32
  }
}

module attributes {stable_mosaic.version = 11 : i64} {
  func.func @_bn_act_kernel(%arg0: i32, %arg1: memref<128x128xf32, #tpu.memory_space<vmem>>, %arg2: memref<1x128xf32, #tpu.memory_space<vmem>>, %arg3: memref<1x128xf32, #tpu.memory_space<vmem>>, %arg4: memref<128x128xf32, #tpu.memory_space<vmem>>) attributes {dimension_semantics = [#tpu.dimension_semantics<parallel>], iteration_bounds = array<i64: 4>, scalar_prefetch = 0 : i64, scratch_operands = 0 : i64, tpu.core_type = #tpu.core_type<tc>, window_params = [{transform_indices = @transform_0, window_bounds = array<i64: 128, 128>}, {pipeline_mode = #tpu.pipeline_mode<synchronous>, transform_indices = @transform_1, window_bounds = array<i64: 1, 128>}, {pipeline_mode = #tpu.pipeline_mode<synchronous>, transform_indices = @transform_2, window_bounds = array<i64: 1, 128>}, {transform_indices = @transform_3, window_bounds = array<i64: 128, 128>}]} {
    %c0 = arith.constant 0 : index
    %c0_0 = arith.constant 0 : index
    %0 = vector.load %arg1[%c0, %c0_0] : memref<128x128xf32, #tpu.memory_space<vmem>>, vector<128x128xf32>
    %c0_1 = arith.constant 0 : index
    %c0_2 = arith.constant 0 : index
    %1 = vector.load %arg2[%c0_1, %c0_2] : memref<1x128xf32, #tpu.memory_space<vmem>>, vector<1x128xf32>
    %2 = vector.broadcast %1 : vector<1x128xf32> to vector<128x128xf32>
    %3 = arith.mulf %0, %2 : vector<128x128xf32>
    %c0_3 = arith.constant 0 : index
    %c0_4 = arith.constant 0 : index
    %4 = vector.load %arg3[%c0_3, %c0_4] : memref<1x128xf32, #tpu.memory_space<vmem>>, vector<1x128xf32>
    %5 = vector.broadcast %4 : vector<1x128xf32> to vector<128x128xf32>
    %6 = arith.addf %3, %5 : vector<128x128xf32>
    %cst = arith.constant 0.00999999977 : f32
    %7 = vector.broadcast %cst : f32 to vector<128x128xf32>
    %8 = arith.mulf %7, %6 : vector<128x128xf32>
    %9 = arith.maximumf %6, %8 : vector<128x128xf32>
    %c0_5 = arith.constant 0 : index
    %c0_6 = arith.constant 0 : index
    %10 = vector.load %arg4[%c0_5, %c0_6] : memref<128x128xf32, #tpu.memory_space<vmem>>, vector<128x128xf32>
    tpu.vector_store %arg4[%c0_5, %c0_6], %9 {strides = array<i32>} : memref<128x128xf32, #tpu.memory_space<vmem>>, vector<128x128xf32>,
    return
  }
  func.func @transform_0(%arg0: i32) -> (i32, i32) {
    %c0_i32 = arith.constant 0 : i32
    %c0_i32_0 = arith.constant 0 : i32
    return %arg0, %c0_i32 : i32, i32
  }
  func.func @transform_1(%arg0: i32) -> (i32, i32) {
    %c0_i32 = arith.constant 0 : i32
    %c0_i32_0 = arith.constant 0 : i32
    %c0_i32_1 = arith.constant 0 : i32
    return %c0_i32, %c0_i32_0 : i32, i32
  }
  func.func @transform_2(%arg0: i32) -> (i32, i32) {
    %c0_i32 = arith.constant 0 : i32
    %c0_i32_0 = arith.constant 0 : i32
    %c0_i32_1 = arith.constant 0 : i32
    return %c0_i32, %c0_i32_0 : i32, i32
  }
  func.func @transform_3(%arg0: i32) -> (i32, i32) {
    %c0_i32 = arith.constant 0 : i32
    %c0_i32_0 = arith.constant 0 : i32
    return %arg0, %c0_i32 : i32, i32
  }
}

</mosaic_0001>

<llo_original>
// kernel: conv_block_forward.2
$region0: #{conv_block_forward.2}
  #allocation0 [shape = 'u32[]', space=smem, size = 0x4, offset = 0x4, fixed_abs, tag = 'smem constant byte address 0x4 - core index']
  #allocation1 [shape = 'u32[144,128]{1,0:T(1,128)}', space=vmem, size = 0x12000, scoped, tag = 'internal scratch']
  %s0 = inlined_call_operand.vmem [shape: f32[512,128], index: 0, kind: input, shape index: {}]
  %s1 = inlined_call_operand.vmem [shape: f32[1,128], index: 1, kind: output, shape index: {0}]
  %s2 = inlined_call_operand.vmem [shape: f32[1,128], index: 2, kind: output, shape index: {1}]
  %3 = xla_tuple %s1, %s2
  %s4 = sld [smem:[#allocation0]]
  $region49: #{conv_block_forward.2} parent=0
    _
  %s6 = ssub.s32 1, %s4
  %s7 = scalar_select 0, %s6, %s4
  loop: start=0, step=1, limit=6
  $region2: #{conv_block_forward.2} parent=0 // loop_pre_header
    _
  $region3: #{conv_block_forward.2} parent=0 // loop_header
    %s9 = sphi 0, %s13
    %p10 = scmp.ge.s32.totalorder %s9, 6
    %s19 = sphi 0, %s21
    %s22 = sphi 0, %s19
    %s23 = sphi 0, %s22
    %s39 = sphi 0, %s23
    %s43 = sphi 0, %s43
    %s45 = sphi 0, %s43
    %s46 = sphi 0, %s45
    %s60 = sphi 0, %s46
    %s64 = sphi 0, %s64
    %s66 = sphi 0, %s64
    %s67 = sphi 0, %s66
    %s81 = sphi 0, %s67
  $region4: #{conv_block_forward.2} parent=0 // loop_header_branch
    %12 = sbr.rel (%p10) target = $region8
  $region5: #{conv_block_forward.2} parent=0 // loop_body
    %s14 = ssub.s32 %s9, 1
    %s15 = ssub.s32 %s9, 2
    %s16 = sadd.s32 %s9, 1
    %s17 = ssub.s32 %s9, %s16
    %p18 = scmp.eq.s32.totalorder %s17, 0
    %s20 = sadd.s32 %s19, 1
    %s21 = scalar_select %p18, %s19, %s20
    %p24 = pneg %p18
    %p25 = scmp.eq.s32.totalorder %s9, 3
    %p26 = por %p24, %p25
    %p27 = scmp.ne.s32.totalorder %s19, %s22
    %p28 = scmp.eq.s32.totalorder %s9, 0
    %p29 = por %p27, %p28
    %p30 = scmp.ne.s32.totalorder %s19, %s22
    %p31 = scmp.eq.s32.totalorder %s14, 3
    %p32 = por %p30, %p31
    %p33 = scmp.ne.s32.totalorder %s22, %s23
    %p34 = scmp.eq.s32.totalorder %s14, 0
    %p35 = por %p33, %p34
    %p36 = scmp.ne.s32.totalorder %s22, %s23
    %p37 = scmp.eq.s32.totalorder %s15, 3
    %p38 = por %p36, %p37
    %p40 = scmp.ne.s32.totalorder %s23, %s39
    %p41 = scmp.eq.s32.totalorder %s15, 0
    %p42 = por %p40, %p41
    %s44 = sadd.s32 %s43, 1
    %p47 = scmp.eq.s32.totalorder %s9, 3
    %p48 = scmp.ne.s32.totalorder %s43, %s45
    %p49 = scmp.eq.s32.totalorder %s9, 0
    %p50 = por %p48, %p49
    %p51 = scmp.ne.s32.totalorder %s43, %s45
    %p52 = scmp.eq.s32.totalorder %s14, 3
    %p53 = por %p51, %p52
    %p54 = scmp.ne.s32.totalorder %s45, %s46
    %p55 = scmp.eq.s32.totalorder %s14, 0
    %p56 = por %p54, %p55
    %p57 = scmp.ne.s32.totalorder %s45, %s46
    %p58 = scmp.eq.s32.totalorder %s15, 3
    %p59 = por %p57, %p58
    %p61 = scmp.ne.s32.totalorder %s46, %s60
    %p62 = scmp.eq.s32.totalorder %s15, 0
    %p63 = por %p61, %p62
    %s65 = sadd.s32 %s64, 1
    %p68 = scmp.eq.s32.totalorder %s9, 3
    %p69 = scmp.ne.s32.totalorder %s64, %s66
    %p70 = scmp.eq.s32.totalorder %s9, 0
    %p71 = por %p69, %p70
    %p72 = scmp.ne.s32.totalorder %s64, %s66
    %p73 = scmp.eq.s32.totalorder %s14, 3
    %p74 = por %p72, %p73
    %p75 = scmp.ne.s32.totalorder %s66, %s67
    %p76 = scmp.eq.s32.totalorder %s14, 0
    %p77 = por %p75, %p76
    %p78 = scmp.ne.s32.totalorder %s66, %s67
    %p79 = scmp.eq.s32.totalorder %s15, 3
    %p80 = por %p78, %p79
    %p82 = scmp.ne.s32.totalorder %s67, %s81
    %p83 = scmp.eq.s32.totalorder %s15, 0
    %p84 = por %p82, %p83
    %p85 = scmp.le.s32.totalorder 1, %s9
    %p86 = scmp.lt.s32.totalorder %s9, 5
    %p87 = pnand %p85, %p86
    %p88 = pneg %p87
    // Predicated region
    $region9: #{conv_block_forward.2} parent=5 // pred_check
      _
    $region10: #{conv_block_forward.2} parent=5 // pred_check_branch
      %90 = sbr.rel (%p87) target = $region12
    $region11: #{conv_block_forward.2} parent=5 // pred_region
      %s91 = ssub.s32 %s9, 1
    $region12: #{conv_block_forward.2} parent=5 // pred_fallthru
      _
    %p92 = scmp.lt.s32.totalorder %s9, 4
    // Predicated region
    $region13: #{conv_block_forward.2} parent=5 // pred_check
      %p93 = pneg %p92
    $region14: #{conv_block_forward.2} parent=5 // pred_check_branch
      %95 = sbr.rel (%p93) target = $region16
    $region15: #{conv_block_forward.2} parent=5 // pred_region
      // Predicated region
      $region17: #{conv_block_forward.2} parent=15 // pred_check
        %p96 = pneg %p29
      $region18: #{conv_block_forward.2} parent=15 // pred_check_branch
        %98 = sbr.rel (%p96) target = $region20
      $region19: #{conv_block_forward.2} parent=15 // pred_region
        %s99 = smul.u32 16, %s9
        %p100 = scmp.lt.s32.totalorder %s99, 63
        %s101 = scalar_select %p100, %s99, 63
        %s102 = smul.addr %s101, 8
        %s103 = scalar_lea.vmem %s0, %s102
        %s104 = smul.u32 16, %s9
      $region20: #{conv_block_forward.2} parent=15 // pred_fallthru
        _
    $region16: #{conv_block_forward.2} parent=5 // pred_fallthru
      _
    %p105 = scmp.le.s32.totalorder 1, %s9
    %p106 = scmp.lt.s32.totalorder %s9, 5
    %p107 = pnand %p105, %p106
    %p108 = pneg %p107
    // Predicated region
    $region21: #{conv_block_forward.2} parent=5 // pred_check
      _
    $region22: #{conv_block_forward.2} parent=5 // pred_check_branch
      %110 = sbr.rel (%p107) target = $region24
    $region23: #{conv_block_forward.2} parent=5 // pred_region
      %s111 = ssub.s32 %s9, 1
      %s112 = smul.u32 16, %s14
      %p113 = scmp.lt.s32.totalorder %s112, 63
      %s114 = scalar_select %p113, %s112, 63
      %s115 = smul.addr %s114, 8
      %s116 = scalar_lea.vmem %s0, %s115
      %p117 = pneg %p35
      %p118 = pneg %p32
      %p119 = pneg %p56
      %p120 = pneg %p53
      %p121 = pneg %p77
      %p122 = pneg %p74
      %s123 = smul.u32 16, %s14
      %p124 = scmp.lt.s32.totalorder %s123, 63
      %s125 = scalar_select %p124, %s123, 63
      %s126 = smul.addr %s125, 8
      %s127 = scalar_lea.vmem %s0, %s126
      %s128 = smul.u32 16, %s14
      %p129 = scmp.eq.s32.totalorder %s14, 0
      // Predicated region
      $region25: #{conv_block_forward.2} parent=23 // pred_check
        %p130 = pneg %p129
      $region26: #{conv_block_forward.2} parent=23 // pred_check_branch
        %132 = sbr.rel (%p130) target = $region28
      $region27: #{conv_block_forward.2} parent=23 // pred_region
        %133 = vst [vmem:[%s1] sm:$0x1] 0.0
        %134 = vst [vmem:[%s2] sm:$0x1] 0.0
      $region28: #{conv_block_forward.2} parent=23 // pred_fallthru
        _
      %v135 = vld [vmem:[%s127] sm:$0xff]
      %v136 = vld [vmem:[%s127 + $0x8] sm:$0xff]
      %v137 = vld [vmem:[%s127 + $0x10] sm:$0xff]
      %v138 = vld [vmem:[%s127 + $0x18] sm:$0xff]
      %v139 = vld [vmem:[%s127 + $0x20] sm:$0xff]
      %v140 = vld [vmem:[%s127 + $0x28] sm:$0xff]
      %v141 = vld [vmem:[%s127 + $0x30] sm:$0xff]
      %v142 = vld [vmem:[%s127 + $0x38] sm:$0xff]
      %v143 = vld [vmem:[%s127 + $0x40] sm:$0xff]
      %v144 = vld [vmem:[%s127 + $0x48] sm:$0xff]
      %v145 = vld [vmem:[%s127 + $0x50] sm:$0xff]
      %v146 = vld [vmem:[%s127 + $0x58] sm:$0xff]
      %v147 = vld [vmem:[%s127 + $0x60] sm:$0xff]
      %v148 = vld [vmem:[%s127 + $0x68] sm:$0xff]
      %v149 = vld [vmem:[%s127 + $0x70] sm:$0xff]
      %v150 = vld [vmem:[%s127 + $0x78] sm:$0xff]
      %v151 = vld [vmem:[%s1] sm:$0x1]
      %v152 = vadd.f32 %v135, %v136
      %v153 = vadd.f32 %v152, %v137
      %v154 = vadd.f32 %v153, %v138
      %v155 = vadd.f32 %v154, %v139
      %v156 = vadd.f32 %v155, %v140
      %v157 = vadd.f32 %v156, %v141
      %v158 = vadd.f32 %v157, %v142
      %v159 = vadd.f32 %v158, %v143
      %v160 = vadd.f32 %v159, %v144
      %v161 = vadd.f32 %v160, %v145
      %v162 = vadd.f32 %v161, %v146
      %v163 = vadd.f32 %v162, %v147
      %v164 = vadd.f32 %v163, %v148
      %v165 = vadd.f32 %v164, %v149
      %v166 = vadd.f32 %v165, %v150
      %v167 = vrot.slane %v166, 4
      %v168 = vadd.f32 %v166, %v167
      %v169 = vrot.slane %v168, 2
      %v170 = vadd.f32 %v168, %v169
      %v171 = vrot.slane %v170, 1
      %v172 = vadd.f32 %v170, %v171
      %v173 = vadd.f32 %v151, %v172
      %174 = vst [vmem:[%s1] sm:$0x1] %v173
      %v175 = vld [vmem:[%s2] sm:$0x1]
      %v176 = vmul.f32 %v135, %v135
      %v177 = vmul.f32 %v136, %v136
      %v178 = vmul.f32 %v137, %v137
      %v179 = vmul.f32 %v138, %v138
      %v180 = vmul.f32 %v139, %v139
      %v181 = vmul.f32 %v140, %v140
      %v182 = vmul.f32 %v141, %v141
      %v183 = vmul.f32 %v142, %v142
      %v184 = vmul.f32 %v143, %v143
      %v185 = vmul.f32 %v144, %v144
      %v186 = vmul.f32 %v145, %v145
      %v187 = vmul.f32 %v146, %v146
      %v188 = vmul.f32 %v147, %v147
      %v189 = vmul.f32 %v148, %v148
      %v190 = vmul.f32 %v149, %v149
      %v191 = vmul.f32 %v150, %v150
      %v192 = vadd.f32 %v176, %v177
      %v193 = vadd.f32 %v192, %v178
      %v194 = vadd.f32 %v193, %v179
      %v195 = vadd.f32 %v194, %v180
      %v196 = vadd.f32 %v195, %v181
      %v197 = vadd.f32 %v196, %v182
      %v198 = vadd.f32 %v197, %v183
      %v199 = vadd.f32 %v198, %v184
      %v200 = vadd.f32 %v199, %v185
      %v201 = vadd.f32 %v200, %v186
      %v202 = vadd.f32 %v201, %v187
      %v203 = vadd.f32 %v202, %v188
      %v204 = vadd.f32 %v203, %v189
      %v205 = vadd.f32 %v204, %v190
      %v206 = vadd.f32 %v205, %v191
      %v207 = vrot.slane %v206, 4
      %v208 = vadd.f32 %v206, %v207
      %v209 = vrot.slane %v208, 2
      %v210 = vadd.f32 %v208, %v209
      %v211 = vrot.slane %v210, 1
      %v212 = vadd.f32 %v210, %v211
      %v213 = vadd.f32 %v175, %v212
      %214 = vst [vmem:[%s2] sm:$0x1] %v213
      // Predicated region
      $region29: #{conv_block_forward.2} parent=23 // pred_check
        %p215 = pneg %p53
      $region30: #{conv_block_forward.2} parent=23 // pred_check_branch
        %217 = sbr.rel (%p215) target = $region32
      $region31: #{conv_block_forward.2} parent=23 // pred_region
        _
      $region32: #{conv_block_forward.2} parent=23 // pred_fallthru
        _
      // Predicated region
      $region33: #{conv_block_forward.2} parent=23 // pred_check
        %p218 = pneg %p74
      $region34: #{conv_block_forward.2} parent=23 // pred_check_branch
        %220 = sbr.rel (%p218) target = $region36
      $region35: #{conv_block_forward.2} parent=23 // pred_region
        _
      $region36: #{conv_block_forward.2} parent=23 // pred_fallthru
        _
      // Predicated region
      $region37: #{conv_block_forward.2} parent=23 // pred_check
        %p221 = pneg %p53
      $region38: #{conv_block_forward.2} parent=23 // pred_check_branch
        %223 = sbr.rel (%p221) target = $region40
      $region39: #{conv_block_forward.2} parent=23 // pred_region
        _
      $region40: #{conv_block_forward.2} parent=23 // pred_fallthru
        _
      // Predicated region
      $region41: #{conv_block_forward.2} parent=23 // pred_check
        %p224 = pneg %p74
      $region42: #{conv_block_forward.2} parent=23 // pred_check_branch
        %226 = sbr.rel (%p224) target = $region44
      $region43: #{conv_block_forward.2} parent=23 // pred_region
        _
      $region44: #{conv_block_forward.2} parent=23 // pred_fallthru
        _
    $region24: #{conv_block_forward.2} parent=5 // pred_fallthru
      _
    %p227 = scmp.le.s32.totalorder 2, %s9
    // Predicated region
    $region45: #{conv_block_forward.2} parent=5 // pred_check
      %p228 = pneg %p227
    $region46: #{conv_block_forward.2} parent=5 // pred_check_branch
      %230 = sbr.rel (%p228) target = $region48
    $region47: #{conv_block_forward.2} parent=5 // pred_region
      %s231 = ssub.s32 %s9, 2
    $region48: #{conv_block_forward.2} parent=5 // pred_fallthru
      _
  $region6: #{conv_block_forward.2} parent=0 // loop_footer
    %s13 = sadd.s32 1, %s9
  $region7: #{conv_block_forward.2} parent=0 // loop_footer_branch
    %8 = sbr.rel target = $region3
  $region8: #{conv_block_forward.2} parent=0 // loop_exit
    _

// kernel: tile.13
$region0: #{tile.13}
  #allocation0 [shape = 's32[1]{0}', space=sflag, size = 0x4, scoped, tag = 'scoped memory for tile.13']
  %s0 = inlined_call_operand.vmem [shape: f32[8], index: 0, kind: input, shape index: {}]
  %s1 = inlined_call_operand.vmem [shape: f32[16,8], index: 1, kind: output, shape index: {}]
  // Predicated region
  $region2: #{tile.13} parent=0 // pred_check
    _
  $region3: #{tile.13} parent=0 // pred_check_branch
    %3 = sbr.rel (0) target = $region5
  $region4: #{tile.13} parent=0 // pred_region
    _
  $region5: #{tile.13} parent=0 // pred_fallthru
    _
  %v4 = vld [vmem:[%s0] ss:$0 sm:$0xff]
  %5 = vst [vmem:[%s1] sm:$0xff] %v4
  %s6 = scalar_lea.vmem %s1, 8
  %7 = vst [vmem:[%s6] sm:$0xff] %v4

// kernel: tile.14
$region0: #{tile.14}
  %s0 = inlined_call_operand.vmem [shape: f32[16,8], index: 0, kind: input, shape index: {}]
  %s1 = inlined_call_operand.vmem [shape: f32[1,128], index: 1, kind: output, shape index: {}]
  $region1: #{tile.14} parent=0
    #allocation0 [shape = 'u8[4096]{0}', space=vmem, size = 0x1000, scoped, tag = 'scoped mem for output reshape']
    %v2 = vld [vmem:[%s0] sm:$0x1]
    %vm3 = vcmask 64512
    %4 = vst.msk [vmem:[#allocation0] sm:$0x1] %vm3, %v2
    %s5 = scalar_lea.vmem %s0, 15
    %v6 = vld [vmem:[%s5] sm:$0x1]
    %7 = vrot.lane.b32.xlu0 %v6, 120
    %v8 = vpop.permute.xlu0 %7
    %vm9 = vcmask 1048512
    %10 = vst.msk [vmem:[#allocation0] sm:$0x1] %vm9, %v8
    %s11 = scalar_lea.vmem %s0, 14
    %v12 = vld [vmem:[%s11] sm:$0x1]
    %13 = vrot.lane.b32.xlu0 %v12, 112
    %v14 = vpop.permute.xlu0 %13
    %vm15 = vcmask 982912
    %16 = vst.msk [vmem:[#allocation0] sm:$0x1] %vm15, %v14
    %s17 = scalar_lea.vmem %s0, 13
    %v18 = vld [vmem:[%s17] sm:$0x1]
    %19 = vrot.lane.b32.xlu0 %v18, 104
    %v20 = vpop.permute.xlu0 %19
    %vm21 = vcmask 917312
    %22 = vst.msk [vmem:[#allocation0] sm:$0x1] %vm21, %v20
    %s23 = scalar_lea.vmem %s0, 12
    %v24 = vld [vmem:[%s23] sm:$0x1]
    %25 = vrot.lane.b32.xlu0 %v24, 96
    %v26 = vpop.permute.xlu0 %25
    %vm27 = vcmask 851712
    %28 = vst.msk [vmem:[#allocation0] sm:$0x1] %vm27, %v26
    %s29 = scalar_lea.vmem %s0, 11
    %v30 = vld [vmem:[%s29] sm:$0x1]
    %31 = vrot.lane.b32.xlu0 %v30, 88
    %v32 = vpop.permute.xlu0 %31
    %vm33 = vcmask 786112
    %34 = vst.msk [vmem:[#allocation0] sm:$0x1] %vm33, %v32
    %s35 = scalar_lea.vmem %s0, 10
    %v36 = vld [vmem:[%s35] sm:$0x1]
    %37 = vrot.lane.b32.xlu0 %v36, 80
    %v38 = vpop.permute.xlu0 %37
    %vm39 = vcmask 720512
    %40 = vst.msk [vmem:[#allocation0] sm:$0x1] %vm39, %v38
    %s41 = scalar_lea.vmem %s0, 9
    %v42 = vld [vmem:[%s41] sm:$0x1]
    %43 = vrot.lane.b32.xlu0 %v42, 72
    %v44 = vpop.permute.xlu0 %43
    %vm45 = vcmask 654912
    %46 = vst.msk [vmem:[#allocation0] sm:$0x1] %vm45, %v44
    %s47 = scalar_lea.vmem %s0, 8
    %v48 = vld [vmem:[%s47] sm:$0x1]
    %49 = vrot.lane.b32.xlu0 %v48, 64
    %v50 = vpop.permute.xlu0 %49
    %vm51 = vcmask 589312
    %52 = vst.msk [vmem:[#allocation0] sm:$0x1] %vm51, %v50
    %s53 = scalar_lea.vmem %s0, 7
    %v54 = vld [vmem:[%s53] sm:$0x1]
    %55 = vrot.lane.b32.xlu0 %v54, 56
    %v56 = vpop.permute.xlu0 %55
    %vm57 = vcmask 523712
    %58 = vst.msk [vmem:[#allocation0] sm:$0x1] %vm57, %v56
    %s59 = scalar_lea.vmem %s0, 6
    %v60 = vld [vmem:[%s59] sm:$0x1]
    %61 = vrot.lane.b32.xlu0 %v60, 48
    %v62 = vpop.permute.xlu0 %61
    %vm63 = vcmask 458112
    %64 = vst.msk [vmem:[#allocation0] sm:$0x1] %vm63, %v62
    %s65 = scalar_lea.vmem %s0, 5
    %v66 = vld [vmem:[%s65] sm:$0x1]
    %67 = vrot.lane.b32.xlu0 %v66, 40
    %v68 = vpop.permute.xlu0 %67
    %vm69 = vcmask 392512
    %70 = vst.msk [vmem:[#allocation0] sm:$0x1] %vm69, %v68
    %s71 = scalar_lea.vmem %s0, 4
    %v72 = vld [vmem:[%s71] sm:$0x1]
    %73 = vrot.lane.b32.xlu0 %v72, 32
    %v74 = vpop.permute.xlu0 %73
    %vm75 = vcmask 326912
    %76 = vst.msk [vmem:[#allocation0] sm:$0x1] %vm75, %v74
    %s77 = scalar_lea.vmem %s0, 3
    %v78 = vld [vmem:[%s77] sm:$0x1]
    %79 = vrot.lane.b32.xlu0 %v78, 24
    %v80 = vpop.permute.xlu0 %79
    %vm81 = vcmask 261312
    %82 = vst.msk [vmem:[#allocation0] sm:$0x1] %vm81, %v80
    %s83 = scalar_lea.vmem %s0, 2
    %v84 = vld [vmem:[%s83] sm:$0x1]
    %85 = vrot.lane.b32.xlu0 %v84, 16
    %v86 = vpop.permute.xlu0 %85
    %vm87 = vcmask 195712
    %88 = vst.msk [vmem:[#allocation0] sm:$0x1] %vm87, %v86
    %s89 = scalar_lea.vmem %s0, 1
    %v90 = vld [vmem:[%s89] sm:$0x1]
    %91 = vrot.lane.b32.xlu0 %v90, 8
    %v92 = vpop.permute.xlu0 %91
    %vm93 = vcmask 130112
    %94 = vst.msk [vmem:[#allocation0] sm:$0x1] %vm93, %v92
    %s96 = sshllo.u32 0, 1
    %v98 = vld [vmem:[#allocation0] sm:%s96]
    %s99 = sshllo.u32 0, 1
    %100 = vst [vmem:[%s1] sm:%s99] %v98

// kernel: conv_block_forward.3
$region0: #{conv_block_forward.3}
  #allocation0 [shape = 'u32[]', space=smem, size = 0x4, offset = 0x4, fixed_abs, tag = 'smem constant byte address 0x4 - core index']
  #allocation1 [shape = 'u32[144,128]{1,0:T(1,128)}', space=vmem, size = 0x12000, scoped, tag = 'internal scratch']
  %s0 = inlined_call_operand.vmem [shape: f32[512,128], index: 0, kind: input, shape index: {}]
  %s1 = inlined_call_operand.vmem [shape: f32[1,128], index: 1, kind: input, shape index: {}]
  %s2 = inlined_call_operand.vmem [shape: f32[1,128], index: 2, kind: input, shape index: {}]
  %s3 = inlined_call_operand.vmem [shape: f32[512,128], index: 3, kind: output, shape index: {}]
  %s4 = sld [smem:[#allocation0]]
  $region45: #{conv_block_forward.3} parent=0
    _
  %s6 = ssub.s32 1, %s4
  %s7 = scalar_select 0, %s6, %s4
  loop: start=0, step=1, limit=6
  $region2: #{conv_block_forward.3} parent=0 // loop_pre_header
    _
  $region3: #{conv_block_forward.3} parent=0 // loop_header
    %s9 = sphi 0, %s13
    %p10 = scmp.ge.s32.totalorder %s9, 6
    %s19 = sphi 0, %s21
    %s22 = sphi 0, %s19
    %s23 = sphi 0, %s22
    %s39 = sphi 0, %s23
    %s43 = sphi 0, %s43
    %s45 = sphi 0, %s43
    %s46 = sphi 0, %s45
    %s60 = sphi 0, %s46
    %s64 = sphi 0, %s64
    %s66 = sphi 0, %s64
    %s67 = sphi 0, %s66
    %s81 = sphi 0, %s67
    %s87 = sphi 0, %s89
    %s90 = sphi 0, %s87
    %s91 = sphi 0, %s90
    %s107 = sphi 0, %s91
  $region4: #{conv_block_forward.3} parent=0 // loop_header_branch
    %12 = sbr.rel (%p10) target = $region8
  $region5: #{conv_block_forward.3} parent=0 // loop_body
    %s14 = ssub.s32 %s9, 1
    %s15 = ssub.s32 %s9, 2
    %s16 = sadd.s32 %s9, 1
    %s17 = ssub.s32 %s9, %s16
    %p18 = scmp.eq.s32.totalorder %s17, 0
    %s20 = sadd.s32 %s19, 1
    %s21 = scalar_select %p18, %s19, %s20
    %p24 = pneg %p18
    %p25 = scmp.eq.s32.totalorder %s9, 3
    %p26 = por %p24, %p25
    %p27 = scmp.ne.s32.totalorder %s19, %s22
    %p28 = scmp.eq.s32.totalorder %s9, 0
    %p29 = por %p27, %p28
    %p30 = scmp.ne.s32.totalorder %s19, %s22
    %p31 = scmp.eq.s32.totalorder %s14, 3
    %p32 = por %p30, %p31
    %p33 = scmp.ne.s32.totalorder %s22, %s23
    %p34 = scmp.eq.s32.totalorder %s14, 0
    %p35 = por %p33, %p34
    %p36 = scmp.ne.s32.totalorder %s22, %s23
    %p37 = scmp.eq.s32.totalorder %s15, 3
    %p38 = por %p36, %p37
    %p40 = scmp.ne.s32.totalorder %s23, %s39
    %p41 = scmp.eq.s32.totalorder %s15, 0
    %p42 = por %p40, %p41
    %s44 = sadd.s32 %s43, 1
    %p47 = scmp.eq.s32.totalorder %s9, 3
    %p48 = scmp.ne.s32.totalorder %s43, %s45
    %p49 = scmp.eq.s32.totalorder %s9, 0
    %p50 = por %p48, %p49
    %p51 = scmp.ne.s32.totalorder %s43, %s45
    %p52 = scmp.eq.s32.totalorder %s14, 3
    %p53 = por %p51, %p52
    %p54 = scmp.ne.s32.totalorder %s45, %s46
    %p55 = scmp.eq.s32.totalorder %s14, 0
    %p56 = por %p54, %p55
    %p57 = scmp.ne.s32.totalorder %s45, %s46
    %p58 = scmp.eq.s32.totalorder %s15, 3
    %p59 = por %p57, %p58
    %p61 = scmp.ne.s32.totalorder %s46, %s60
    %p62 = scmp.eq.s32.totalorder %s15, 0
    %p63 = por %p61, %p62
    %s65 = sadd.s32 %s64, 1
    %p68 = scmp.eq.s32.totalorder %s9, 3
    %p69 = scmp.ne.s32.totalorder %s64, %s66
    %p70 = scmp.eq.s32.totalorder %s9, 0
    %p71 = por %p69, %p70
    %p72 = scmp.ne.s32.totalorder %s64, %s66
    %p73 = scmp.eq.s32.totalorder %s14, 3
    %p74 = por %p72, %p73
    %p75 = scmp.ne.s32.totalorder %s66, %s67
    %p76 = scmp.eq.s32.totalorder %s14, 0
    %p77 = por %p75, %p76
    %p78 = scmp.ne.s32.totalorder %s66, %s67
    %p79 = scmp.eq.s32.totalorder %s15, 3
    %p80 = por %p78, %p79
    %p82 = scmp.ne.s32.totalorder %s67, %s81
    %p83 = scmp.eq.s32.totalorder %s15, 0
    %p84 = por %p82, %p83
    %s85 = ssub.s32 %s9, %s16
    %p86 = scmp.eq.s32.totalorder %s85, 0
    %s88 = sadd.s32 %s87, 1
    %s89 = scalar_select %p86, %s87, %s88
    %p92 = pneg %p86
    %p93 = scmp.eq.s32.totalorder %s9, 3
    %p94 = por %p92, %p93
    %p95 = scmp.ne.s32.totalorder %s87, %s90
    %p96 = scmp.eq.s32.totalorder %s9, 0
    %p97 = por %p95, %p96
    %p98 = scmp.ne.s32.totalorder %s87, %s90
    %p99 = scmp.eq.s32.totalorder %s14, 3
    %p100 = por %p98, %p99
    %p101 = scmp.ne.s32.totalorder %s90, %s91
    %p102 = scmp.eq.s32.totalorder %s14, 0
    %p103 = por %p101, %p102
    %p104 = scmp.ne.s32.totalorder %s90, %s91
    %p105 = scmp.eq.s32.totalorder %s15, 3
    %p106 = por %p104, %p105
    %p108 = scmp.ne.s32.totalorder %s91, %s107
    %p109 = scmp.eq.s32.totalorder %s15, 0
    %p110 = por %p108, %p109
    %p111 = scmp.le.s32.totalorder 1, %s9
    %p112 = scmp.lt.s32.totalorder %s9, 5
    %p113 = pnand %p111, %p112
    %p114 = pneg %p113
    // Predicated region
    $region9: #{conv_block_forward.3} parent=5 // pred_check
      _
    $region10: #{conv_block_forward.3} parent=5 // pred_check_branch
      %116 = sbr.rel (%p113) target = $region12
    $region11: #{conv_block_forward.3} parent=5 // pred_region
      %s117 = ssub.s32 %s9, 1
      // Predicated region
      $region13: #{conv_block_forward.3} parent=11 // pred_check
        %p118 = pneg %p56
      $region14: #{conv_block_forward.3} parent=11 // pred_check_branch
        %120 = sbr.rel (%p118) target = $region16
      $region15: #{conv_block_forward.3} parent=11 // pred_region
        _
      $region16: #{conv_block_forward.3} parent=11 // pred_fallthru
        _
      // Predicated region
      $region17: #{conv_block_forward.3} parent=11 // pred_check
        %p121 = pneg %p77
      $region18: #{conv_block_forward.3} parent=11 // pred_check_branch
        %123 = sbr.rel (%p121) target = $region20
      $region19: #{conv_block_forward.3} parent=11 // pred_region
        _
      $region20: #{conv_block_forward.3} parent=11 // pred_fallthru
        _
    $region12: #{conv_block_forward.3} parent=5 // pred_fallthru
      _
    %p124 = scmp.lt.s32.totalorder %s9, 4
    // Predicated region
    $region21: #{conv_block_forward.3} parent=5 // pred_check
      %p125 = pneg %p124
    $region22: #{conv_block_forward.3} parent=5 // pred_check_branch
      %127 = sbr.rel (%p125) target = $region24
    $region23: #{conv_block_forward.3} parent=5 // pred_region
      // Predicated region
      $region25: #{conv_block_forward.3} parent=23 // pred_check
        %p128 = pneg %p29
      $region26: #{conv_block_forward.3} parent=23 // pred_check_branch
        %130 = sbr.rel (%p128) target = $region28
      $region27: #{conv_block_forward.3} parent=23 // pred_region
        %s131 = smul.u32 16, %s9
        %p132 = scmp.lt.s32.totalorder %s131, 63
        %s133 = scalar_select %p132, %s131, 63
        %s134 = smul.addr %s133, 8
        %s135 = scalar_lea.vmem %s0, %s134
        %s136 = smul.u32 16, %s9
      $region28: #{conv_block_forward.3} parent=23 // pred_fallthru
        _
    $region24: #{conv_block_forward.3} parent=5 // pred_fallthru
      _
    %p137 = scmp.le.s32.totalorder 1, %s9
    %p138 = scmp.lt.s32.totalorder %s9, 5
    %p139 = pnand %p137, %p138
    %p140 = pneg %p139
    // Predicated region
    $region29: #{conv_block_forward.3} parent=5 // pred_check
      _
    $region30: #{conv_block_forward.3} parent=5 // pred_check_branch
      %142 = sbr.rel (%p139) target = $region32
    $region31: #{conv_block_forward.3} parent=5 // pred_region
      %s143 = ssub.s32 %s9, 1
      %s144 = smul.u32 16, %s14
      %p145 = scmp.lt.s32.totalorder %s144, 63
      %s146 = scalar_select %p145, %s144, 63
      %s147 = smul.addr %s146, 8
      %s148 = scalar_lea.vmem %s0, %s147
      %p149 = pneg %p35
      %p150 = pneg %p32
      %p151 = pneg %p56
      %p152 = pneg %p53
      %p153 = pneg %p77
      %p154 = pneg %p74
      %p155 = pneg %p103
      %p156 = pneg %p100
      %s157 = smul.u32 16, %s14
      %p158 = scmp.lt.s32.totalorder %s157, 63
      %s159 = scalar_select %p158, %s157, 63
      %s160 = smul.addr %s159, 8
      %s161 = scalar_lea.vmem %s3, %s160
      %s162 = smul.u32 16, %s14
      %p163 = scmp.lt.s32.totalorder %s162, 63
      %s164 = scalar_select %p163, %s162, 63
      %s165 = smul.addr %s164, 8
      %s166 = scalar_lea.vmem %s0, %s165
      %s167 = smul.u32 16, %s14
      %s168 = smul.u32 16, %s14
      %p169 = scmp.lt.s32.totalorder %s168, 63
      %s170 = scalar_select %p169, %s168, 63
      %s171 = smul.addr %s170, 8
      %s172 = scalar_lea.vmem %s3, %s171
      %s173 = smul.u32 16, %s14
      %v174 = vld [vmem:[%s166] sm:$0xff]
      %v175 = vld [vmem:[%s166 + $0x8] sm:$0xff]
      %v176 = vld [vmem:[%s166 + $0x10] sm:$0xff]
      %v177 = vld [vmem:[%s166 + $0x18] sm:$0xff]
      %v178 = vld [vmem:[%s166 + $0x20] sm:$0xff]
      %v179 = vld [vmem:[%s166 + $0x28] sm:$0xff]
      %v180 = vld [vmem:[%s166 + $0x30] sm:$0xff]
      %v181 = vld [vmem:[%s166 + $0x38] sm:$0xff]
      %v182 = vld [vmem:[%s166 + $0x40] sm:$0xff]
      %v183 = vld [vmem:[%s166 + $0x48] sm:$0xff]
      %v184 = vld [vmem:[%s166 + $0x50] sm:$0xff]
      %v185 = vld [vmem:[%s166 + $0x58] sm:$0xff]
      %v186 = vld [vmem:[%s166 + $0x60] sm:$0xff]
      %v187 = vld [vmem:[%s166 + $0x68] sm:$0xff]
      %v188 = vld [vmem:[%s166 + $0x70] sm:$0xff]
      %v189 = vld [vmem:[%s166 + $0x78] sm:$0xff]
      %v190 = vld [vmem:[%s1] sm:$0x1]
      %v192 = vlaneseq
      %v193 = vshrl.u32 %v192, 7
      %v194 = vsub.s32 0, %v193
      %v195 = vrot.slane %v190, %v194
      %v197 = vmul.f32 %v174, %v195
      %v198 = vmul.f32 %v175, %v195
      %v199 = vmul.f32 %v176, %v195
      %v200 = vmul.f32 %v177, %v195
      %v201 = vmul.f32 %v178, %v195
      %v202 = vmul.f32 %v179, %v195
      %v203 = vmul.f32 %v180, %v195
      %v204 = vmul.f32 %v181, %v195
      %v205 = vmul.f32 %v182, %v195
      %v206 = vmul.f32 %v183, %v195
      %v207 = vmul.f32 %v184, %v195
      %v208 = vmul.f32 %v185, %v195
      %v209 = vmul.f32 %v186, %v195
      %v210 = vmul.f32 %v187, %v195
      %v211 = vmul.f32 %v188, %v195
      %v212 = vmul.f32 %v189, %v195
      %v213 = vld [vmem:[%s2] sm:$0x1]
      %v215 = vlaneseq
      %v216 = vshrl.u32 %v215, 7
      %v217 = vsub.s32 0, %v216
      %v218 = vrot.slane %v213, %v217
      %v220 = vadd.f32 %v197, %v218
      %v221 = vadd.f32 %v198, %v218
      %v222 = vadd.f32 %v199, %v218
      %v223 = vadd.f32 %v200, %v218
      %v224 = vadd.f32 %v201, %v218
      %v225 = vadd.f32 %v202, %v218
      %v226 = vadd.f32 %v203, %v218
      %v227 = vadd.f32 %v204, %v218
      %v228 = vadd.f32 %v205, %v218
      %v229 = vadd.f32 %v206, %v218
      %v230 = vadd.f32 %v207, %v218
      %v231 = vadd.f32 %v208, %v218
      %v232 = vadd.f32 %v209, %v218
      %v233 = vadd.f32 %v210, %v218
      %v234 = vadd.f32 %v211, %v218
      %v235 = vadd.f32 %v212, %v218
      %v236 = vmul.f32 %v220, 0.01
      %v237 = vmul.f32 %v221, 0.01
      %v238 = vmul.f32 %v222, 0.01
      %v239 = vmul.f32 %v223, 0.01
      %v240 = vmul.f32 %v224, 0.01
      %v241 = vmul.f32 %v225, 0.01
      %v242 = vmul.f32 %v226, 0.01
      %v243 = vmul.f32 %v227, 0.01
      %v244 = vmul.f32 %v228, 0.01
      %v245 = vmul.f32 %v229, 0.01
      %v246 = vmul.f32 %v230, 0.01
      %v247 = vmul.f32 %v231, 0.01
      %v248 = vmul.f32 %v232, 0.01
      %v249 = vmul.f32 %v233, 0.01
      %v250 = vmul.f32 %v234, 0.01
      %v251 = vmul.f32 %v235, 0.01
      %v252 = vmax.f32 %v220, %v236
      %v253 = vmax.f32 %v221, %v237
      %v254 = vmax.f32 %v222, %v238
      %v255 = vmax.f32 %v223, %v239
      %v256 = vmax.f32 %v224, %v240
      %v257 = vmax.f32 %v225, %v241
      %v258 = vmax.f32 %v226, %v242
      %v259 = vmax.f32 %v227, %v243
      %v260 = vmax.f32 %v228, %v244
      %v261 = vmax.f32 %v229, %v245
      %v262 = vmax.f32 %v230, %v246
      %v263 = vmax.f32 %v231, %v247
      %v264 = vmax.f32 %v232, %v248
      %v265 = vmax.f32 %v233, %v249
      %v266 = vmax.f32 %v234, %v250
      %v267 = vmax.f32 %v235, %v251
      %268 = vst [vmem:[%s172] sm:$0xff] %v252
      %269 = vst [vmem:[%s172 + $0x8] sm:$0xff] %v253
      %270 = vst [vmem:[%s172 + $0x10] sm:$0xff] %v254
      %271 = vst [vmem:[%s172 + $0x18] sm:$0xff] %v255
      %272 = vst [vmem:[%s172 + $0x20] sm:$0xff] %v256
      %273 = vst [vmem:[%s172 + $0x28] sm:$0xff] %v257
      %274 = vst [vmem:[%s172 + $0x30] sm:$0xff] %v258
      %275 = vst [vmem:[%s172 + $0x38] sm:$0xff] %v259
      %276 = vst [vmem:[%s172 + $0x40] sm:$0xff] %v260
      %277 = vst [vmem:[%s172 + $0x48] sm:$0xff] %v261
      %278 = vst [vmem:[%s172 + $0x50] sm:$0xff] %v262
      %279 = vst [vmem:[%s172 + $0x58] sm:$0xff] %v263
      %280 = vst [vmem:[%s172 + $0x60] sm:$0xff] %v264
      %281 = vst [vmem:[%s172 + $0x68] sm:$0xff] %v265
      %282 = vst [vmem:[%s172 + $0x70] sm:$0xff] %v266
      %283 = vst [vmem:[%s172 + $0x78] sm:$0xff] %v267
      %s284 = smul.u32 16, %s14
      %p285 = scmp.lt.s32.totalorder %s284, 63
      %s286 = scalar_select %p285, %s284, 63
      %s287 = smul.addr %s286, 8
      %s288 = scalar_lea.vmem %s3, %s287
      // Predicated region
      $region33: #{conv_block_forward.3} parent=31 // pred_check
        %p289 = pneg %p100
      $region34: #{conv_block_forward.3} parent=31 // pred_check_branch
        %291 = sbr.rel (%p289) target = $region36
      $region35: #{conv_block_forward.3} parent=31 // pred_region
        %s292 = smul.u32 16, %s14
      $region36: #{conv_block_forward.3} parent=31 // pred_fallthru
        _
    $region32: #{conv_block_forward.3} parent=5 // pred_fallthru
      _
    %p293 = scmp.le.s32.totalorder 2, %s9
    // Predicated region
    $region37: #{conv_block_forward.3} parent=5 // pred_check
      %p294 = pneg %p293
    $region38: #{conv_block_forward.3} parent=5 // pred_check_branch
      %296 = sbr.rel (%p294) target = $region40
    $region39: #{conv_block_forward.3} parent=5 // pred_region
      %s297 = ssub.s32 %s9, 2
      // Predicated region
      $region41: #{conv_block_forward.3} parent=39 // pred_check
        %p298 = pneg %p106
      $region42: #{conv_block_forward.3} parent=39 // pred_check_branch
        %300 = sbr.rel (%p298) target = $region44
      $region43: #{conv_block_forward.3} parent=39 // pred_region
        %s301 = smul.u32 16, %s15
        %p302 = scmp.lt.s32.totalorder %s301, 63
        %s303 = scalar_select %p302, %s301, 63
        %s304 = smul.addr %s303, 8
        %s305 = scalar_lea.vmem %s3, %s304
      $region44: #{conv_block_forward.3} parent=39 // pred_fallthru
        _
    $region40: #{conv_block_forward.3} parent=5 // pred_fallthru
      _
  $region6: #{conv_block_forward.3} parent=0 // loop_footer
    %s13 = sadd.s32 1, %s9
  $region7: #{conv_block_forward.3} parent=0 // loop_footer_branch
    %8 = sbr.rel target = $region3
  $region8: #{conv_block_forward.3} parent=0 // loop_exit
    _

</llo_original>
